<compile_context>
chip_gen: v6e
topology: v6e:2x2x1
jax: 0.10.0
libtpu: 0.0.40
codegen_flags: <defaults>
</compile_context>

<pallas_src>
import functools

import jax
import jax.numpy as jnp
from jax.experimental import pallas as pl
from jax.experimental.pallas import tpu as pltpu


def deepphylo_kernel(x_ref, ids_ref, wab_ref, table_ref, wconv_ref, w1_ref,
                     slab_ref, out_ref, *, batch, seq_len, hidden,
                     kernel_size_conv, kernel_size_pool, vocab):
    B, L, H = batch, seq_len, hidden
    K, P, V = kernel_size_conv, kernel_size_pool, vocab
    H8 = H // 8
    Lc = L - K + 1                  # Conv1d (valid, stride 1) output length
    nwp = (Lc // P) * P             # rows covered by complete MaxPool windows

    # Small packed parameters: one (8, 128) slab == one DMA.
    b_ab    = slab_ref[0:1, 0:H]    # (1, H)
    c_shift = slab_ref[1:2, 0:H]    # (1, H)   folded BN + conv bias
    b1      = slab_ref[2:3, 0:H8]   # (1, H//8)
    w2_row  = slab_ref[3:4, 0:H8]   # (1, H//8)
    b2      = slab_ref[4:5, 0:1]    # (1, 1)

    # ---- fc_abundance: Linear(IS -> H) + ReLU, whole batch at once ----
    xa = jnp.maximum(
        jnp.dot(x_ref[...], wab_ref[...], preferred_element_type=jnp.float32)
        + b_ab, 0.0)                                                # (B, H)

    # ---- embedding gather + fc_phy fused: one-hot @ precomputed table ----
    # (V is tiny; at larger V/L switch to a scalar-prefetch DMA gather.)
    ids = ids_ref[...]                                              # (B*L, 1)
    vocab_iota = jax.lax.broadcasted_iota(jnp.int32, (1, V), 1)     # (1, V)
    onehot = (ids == vocab_iota).astype(jnp.float32)                # (B*L, V)
    h = jnp.dot(onehot, table_ref[...],
                preferred_element_type=jnp.float32)                 # (B*L, H)

    # ---- Conv1d(H, H, K) with folded BN: K-accumulating matmul (no im2col) ----
    # acc[t] = sum_k h[t+k] @ w_conv[k]; rows that straddle a batch boundary
    # are junk but never read (maxpool only touches t < nw*P <= Lc per batch).
    T = B * L - K + 1
    acc = jnp.zeros((T, H), jnp.float32)
    for k in range(K):                             # K is a small model constant
        acc = acc + jnp.dot(h[k:k + T, :], wconv_ref[k],
                            preferred_element_type=jnp.float32)
    conv = jnp.maximum(acc + c_shift, 0.0)                          # (T, H)

    # ---- MaxPool1d(P) + global max == max over first nw*P conv rows ----
    # Per-batch slices start at b*L (sublane-aligned for L % 8 == 0); B tiny.
    xc = jnp.concatenate(
        [jnp.max(conv[b * L:b * L + nwp, :], axis=0, keepdims=True)
         for b in range(B)], axis=0)                                # (B, H)

    # ---- gate + fc_pred; final H//8 -> 1 projection on the VPU/XLU ----
    z = xa * xc                                                     # (B, H)
    z1 = jnp.maximum(
        jnp.dot(z, w1_ref[...], preferred_element_type=jnp.float32) + b1,
        0.0)                                                        # (B, H//8)
    res = jnp.sum(z1 * w2_row, axis=-1, keepdims=True) + b2         # (B, 1)

    # Lane-dense full-block store; the wrapper reads column 0.
    out_ref[...] = jnp.broadcast_to(res, out_ref.shape)


def prepare_params(params, *, kernel_size_conv=7, eps=1e-5):
    """One-time, load-time folding + packing (NOT on the per-call path)."""
    emb = params["embeddings"].astype(jnp.float32)                  # (V, E)
    H = params["w_ab"].shape[1]
    H8 = H // 8
    assert H <= 128 and H8 + 1 <= 128, "slab packing assumes hidden <= 128"

    # fc_phy pushed through every embedding row once -> (V, H) table.
    phy_table = emb @ params["w_phy"] + params["b_phy"]

    # Fold inference-mode BatchNorm + conv bias into weights / one shift.
    scale = params["bn_gamma"] / jnp.sqrt(params["bn_running_var"] + eps)
    shift = params["bn_beta"] - params["bn_running_mean"] * scale
    w_conv = params["w_conv"].astype(jnp.float32) * scale[None, None, :]
    conv_shift = params["b_conv"] * scale + shift                   # (H,)

    # Pack all sub-vreg parameters into one (8, 128) slab -> single DMA.
    slab = jnp.zeros((8, 128), jnp.float32)
    slab = slab.at[0, :H].set(params["b_ab"].astype(jnp.float32))
    slab = slab.at[1, :H].set(conv_shift.astype(jnp.float32))
    slab = slab.at[2, :H8].set(params["b1"].astype(jnp.float32))
    slab = slab.at[3, :H8].set(params["w2"].reshape(-1).astype(jnp.float32))
    slab = slab.at[4, 0].set(params["b2"].reshape(()).astype(jnp.float32))

    return {
        "w_ab": params["w_ab"].astype(jnp.float32),                 # (IS, H)
        "phy_table": phy_table.astype(jnp.float32),                 # (V, H)
        "w_conv": w_conv.astype(jnp.float32),                       # (K, H, H)
        "w1": params["w1"].astype(jnp.float32),                     # (H, H//8)
        "slab": slab,                                               # (8, 128)
    }


@functools.partial(jax.jit, static_argnames=("kernel_size_pool",))
def deepphylo_forward(x, ids, prepared, *, kernel_size_pool=4):
    B, L = ids.shape
    V, H = prepared["phy_table"].shape
    K = prepared["w_conv"].shape[0]

    inputs = (
        x.astype(jnp.float32),
        ids.astype(jnp.int32).reshape(B * L, 1),
        prepared["w_ab"],
        prepared["phy_table"],
        prepared["w_conv"],
        prepared["w1"],
        prepared["slab"],
    )

    kernel = functools.partial(
        deepphylo_kernel, batch=B, seq_len=L, hidden=H,
        kernel_size_conv=K, kernel_size_pool=kernel_size_pool, vocab=V)

    # Tiny working set: everything fully resident in VMEM, no grid tiling.
    out = pl.pallas_call(
        kernel,
        out_shape=jax.ShapeDtypeStruct((B, 128), jnp.float32),
        in_specs=[pl.BlockSpec(memory_space=pltpu.MemorySpace.VMEM)] * len(inputs),
        out_specs=pl.BlockSpec(memory_space=pltpu.MemorySpace.VMEM),
    )(*inputs)
    return out[:, :1]                                               # (B, 1)


def deepphylo_reference(x, ids, params, *, kernel_size_conv=7, kernel_size_pool=4):
    """Pure-JAX reference of the same forward pass (sanity check)."""
    eps = 1e-5
    K, P = kernel_size_conv, kernel_size_pool
    xa = jax.nn.relu(x @ params["w_ab"] + params["b_ab"])            # (B, H)
    emb = jnp.take(params["embeddings"], ids, axis=0)                # (B, L, E)
    h = emb @ params["w_phy"] + params["b_phy"]                      # (B, L, H)
    L = h.shape[1]
    Lc = L - K + 1
    acc = jnp.zeros((h.shape[0], Lc, h.shape[2]), jnp.float32)
    for k in range(K):
        acc = acc + jnp.einsum("bti,io->bto", h[:, k:k + Lc, :], params["w_conv"][k])
    acc = acc + params["b_conv"]
    scale = params["bn_gamma"] / jnp.sqrt(params["bn_running_var"] + eps)
    shift = params["bn_beta"] - params["bn_running_mean"] * scale
    acc = jax.nn.relu(acc * scale + shift)
    nw = Lc // P
    xc = jnp.max(acc[:, : nw * P, :], axis=1)                        # (B, H)
    z = xa * xc
    z1 = jax.nn.relu(z @ params["w1"] + params["b1"])
    return z1 @ params["w2"] + params["b2"]


if __name__ == "__main__":
    key = jax.random.PRNGKey(0)
    B, H, IS, E, L = 2, 32, 16, 8, 16       # hidden_size=32, input_size=16
    K, P = 7, 4
    ks = jax.random.split(key, 13)

    params = {
        "embeddings": jax.random.normal(ks[0], (IS + 1, E), jnp.float32),
        # Linear weights stored transposed (in_features, out_features)
        "w_ab": jax.random.normal(ks[1], (IS, H), jnp.float32) * 0.1,
        "b_ab": jax.random.normal(ks[2], (H,), jnp.float32) * 0.1,
        "w_phy": jax.random.normal(ks[3], (E, H), jnp.float32) * 0.1,
        "b_phy": jax.random.normal(ks[4], (H,), jnp.float32) * 0.1,
        # Conv1d weight stored as (K, H_in, H_out); torch layout is (H_out, H_in, K)
        "w_conv": jax.random.normal(ks[5], (K, H, H), jnp.float32) * 0.1,
        "b_conv": jax.random.normal(ks[6], (H,), jnp.float32) * 0.1,
        # BatchNorm1d parameters / running stats (PyTorch defaults)
        "bn_gamma": jnp.ones((H,), jnp.float32),
        "bn_beta": jnp.zeros((H,), jnp.float32),
        "bn_running_mean": jnp.zeros((H,), jnp.float32),
        "bn_running_var": jnp.ones((H,), jnp.float32),
        "w1": jax.random.normal(ks[7], (H, H // 8), jnp.float32) * 0.1,
        "b1": jax.random.normal(ks[8], (H // 8,), jnp.float32) * 0.1,
        "w2": jax.random.normal(ks[9], (H // 8, 1), jnp.float32) * 0.1,
        "b2": jax.random.normal(ks[10], (1,), jnp.float32) * 0.1,
    }

    x = jax.random.normal(ks[11], (B, IS), jnp.float32)
    ids = jax.random.randint(ks[12], (B, L), 0, IS + 1)

    # One-time folding/packing, then the single-dispatch jitted forward.
    prepared = prepare_params(params, kernel_size_conv=K)
    out = deepphylo_forward(x, ids, prepared, kernel_size_pool=P)
    out = jax.block_until_ready(out)
    assert out.shape == (B, 1), out.shape

    ref = deepphylo_reference(x, ids, params, kernel_size_conv=K, kernel_size_pool=P)
    assert jnp.allclose(out, ref, rtol=1e-3, atol=1e-3), (out, ref)

    print("KERNEL_OK")
</pallas_src>

<mosaic_0001>
module attributes {stable_mosaic.version = 11 : i64} {
  func.func @deepphylo_kernel(%arg0: memref<2x16xf32, #tpu.memory_space<vmem>>, %arg1: memref<32x1xi32, #tpu.memory_space<vmem>>, %arg2: memref<16x32xf32, #tpu.memory_space<vmem>>, %arg3: memref<17x32xf32, #tpu.memory_space<vmem>>, %arg4: memref<7x32x32xf32, #tpu.memory_space<vmem>>, %arg5: memref<32x4xf32, #tpu.memory_space<vmem>>, %arg6: memref<8x128xf32, #tpu.memory_space<vmem>>, %arg7: memref<2x128xf32, #tpu.memory_space<vmem>>) attributes {dimension_semantics = [], scalar_prefetch = 0 : i64, scratch_operands = 0 : i64, tpu.core_type = #tpu.core_type<tc>} {
    %c0 = arith.constant 0 : index
    %c0_0 = arith.constant 0 : index
    %0 = vector.load %arg6[%c0, %c0_0] : memref<8x128xf32, #tpu.memory_space<vmem>>, vector<1x32xf32>
    %c1 = arith.constant 1 : index
    %c0_1 = arith.constant 0 : index
    %1 = vector.load %arg6[%c1, %c0_1] : memref<8x128xf32, #tpu.memory_space<vmem>>, vector<1x32xf32>
    %c2 = arith.constant 2 : index
    %c0_2 = arith.constant 0 : index
    %2 = vector.load %arg6[%c2, %c0_2] : memref<8x128xf32, #tpu.memory_space<vmem>>, vector<1x4xf32>
    %c3 = arith.constant 3 : index
    %c0_3 = arith.constant 0 : index
    %3 = vector.load %arg6[%c3, %c0_3] : memref<8x128xf32, #tpu.memory_space<vmem>>, vector<1x4xf32>
    %c4 = arith.constant 4 : index
    %c0_4 = arith.constant 0 : index
    %4 = vector.load %arg6[%c4, %c0_4] : memref<8x128xf32, #tpu.memory_space<vmem>>, vector<1x1xf32>
    %c0_5 = arith.constant 0 : index
    %c0_6 = arith.constant 0 : index
    %5 = vector.load %arg0[%c0_5, %c0_6] : memref<2x16xf32, #tpu.memory_space<vmem>>, vector<2x16xf32>
    %c0_7 = arith.constant 0 : index
    %c0_8 = arith.constant 0 : index
    %6 = vector.load %arg2[%c0_7, %c0_8] : memref<16x32xf32, #tpu.memory_space<vmem>>, vector<16x32xf32>
    %cst = arith.constant dense<0.000000e+00> : vector<2x32xf32>
    %7 = tpu.matmul %5, %6, %cst {dimension_numbers = #tpu.dot_dimension_numbers<[1], [0], [0], [1], [0, 0, 1, 1], [], []>} : vector<2x16xf32>, vector<16x32xf32>, vector<2x32xf32> -> vector<2x32xf32>
    %8 = vector.broadcast %0 : vector<1x32xf32> to vector<2x32xf32>
    %9 = arith.addf %7, %8 : vector<2x32xf32>
    %cst_9 = arith.constant 0.000000e+00 : f32
    %10 = vector.broadcast %cst_9 : f32 to vector<2x32xf32>
    %11 = arith.maximumf %9, %10 : vector<2x32xf32>
    %c0_10 = arith.constant 0 : index
    %c0_11 = arith.constant 0 : index
    %12 = vector.load %arg1[%c0_10, %c0_11] : memref<32x1xi32, #tpu.memory_space<vmem>>, vector<32x1xi32>
    %13 = tpu.iota {dimensions = array<i32: 1>} : vector<1x17xi32>
    %14 = vector.broadcast %12 : vector<32x1xi32> to vector<32x17xi32>
    %15 = vector.broadcast %13 : vector<1x17xi32> to vector<32x17xi32>
    %16 = arith.cmpi eq, %14, %15 : vector<32x17xi32>
    %17 = arith.extui %16 : vector<32x17xi1> to vector<32x17xi32>
    %18 = arith.sitofp %17 : vector<32x17xi32> to vector<32x17xf32>
    %c0_12 = arith.constant 0 : index
    %c0_13 = arith.constant 0 : index
    %19 = vector.load %arg3[%c0_12, %c0_13] : memref<17x32xf32, #tpu.memory_space<vmem>>, vector<17x32xf32>
    %cst_14 = arith.constant dense<0.000000e+00> : vector<32x32xf32>
    %20 = tpu.matmul %18, %19, %cst_14 {dimension_numbers = #tpu.dot_dimension_numbers<[1], [0], [0], [1], [0, 0, 1, 1], [], []>} : vector<32x17xf32>, vector<17x32xf32>, vector<32x32xf32> -> vector<32x32xf32>
    %cst_15 = arith.constant 0.000000e+00 : f32
    %21 = vector.broadcast %cst_15 : f32 to vector<26x32xf32>
    %22 = vector.extract_strided_slice %20 {offsets = [0, 0], sizes = [26, 32], strides = [1, 1]} : vector<32x32xf32> to vector<26x32xf32>
    %c0_16 = arith.constant 0 : index
    %c0_17 = arith.constant 0 : index
    %c0_18 = arith.constant 0 : index
    %23 = vector.load %arg4[%c0_16, %c0_17, %c0_18] : memref<7x32x32xf32, #tpu.memory_space<vmem>>, vector<1x32x32xf32>
    %24 = vector.shape_cast %23 : vector<1x32x32xf32> to vector<32x32xf32>
    %cst_19 = arith.constant dense<0.000000e+00> : vector<26x32xf32>
    %25 = tpu.matmul %22, %24, %cst_19 {dimension_numbers = #tpu.dot_dimension_numbers<[1], [0], [0], [1], [0, 0, 1, 1], [], []>} : vector<26x32xf32>, vector<32x32xf32>, vector<26x32xf32> -> vector<26x32xf32>
    %26 = arith.addf %21, %25 : vector<26x32xf32>
    %27 = vector.extract_strided_slice %20 {offsets = [1, 0], sizes = [26, 32], strides = [1, 1]} : vector<32x32xf32> to vector<26x32xf32>
    %c1_20 = arith.constant 1 : index
    %c0_21 = arith.constant 0 : index
    %c0_22 = arith.constant 0 : index
    %28 = vector.load %arg4[%c1_20, %c0_21, %c0_22] : memref<7x32x32xf32, #tpu.memory_space<vmem>>, vector<1x32x32xf32>
    %29 = vector.shape_cast %28 : vector<1x32x32xf32> to vector<32x32xf32>
    %cst_23 = arith.constant dense<0.000000e+00> : vector<26x32xf32>
    %30 = tpu.matmul %27, %29, %cst_23 {dimension_numbers = #tpu.dot_dimension_numbers<[1], [0], [0], [1], [0, 0, 1, 1], [], []>} : vector<26x32xf32>, vector<32x32xf32>, vector<26x32xf32> -> vector<26x32xf32>
    %31 = arith.addf %26, %30 : vector<26x32xf32>
    %32 = vector.extract_strided_slice %20 {offsets = [2, 0], sizes = [26, 32], strides = [1, 1]} : vector<32x32xf32> to vector<26x32xf32>
    %c2_24 = arith.constant 2 : index
    %c0_25 = arith.constant 0 : index
    %c0_26 = arith.constant 0 : index
    %33 = vector.load %arg4[%c2_24, %c0_25, %c0_26] : memref<7x32x32xf32, #tpu.memory_space<vmem>>, vector<1x32x32xf32>
    %34 = vector.shape_cast %33 : vector<1x32x32xf32> to vector<32x32xf32>
    %cst_27 = arith.constant dense<0.000000e+00> : vector<26x32xf32>
    %35 = tpu.matmul %32, %34, %cst_27 {dimension_numbers = #tpu.dot_dimension_numbers<[1], [0], [0], [1], [0, 0, 1, 1], [], []>} : vector<26x32xf32>, vector<32x32xf32>, vector<26x32xf32> -> vector<26x32xf32>
    %36 = arith.addf %31, %35 : vector<26x32xf32>
    %37 = vector.extract_strided_slice %20 {offsets = [3, 0], sizes = [26, 32], strides = [1, 1]} : vector<32x32xf32> to vector<26x32xf32>
    %c3_28 = arith.constant 3 : index
    %c0_29 = arith.constant 0 : index
    %c0_30 = arith.constant 0 : index
    %38 = vector.load %arg4[%c3_28, %c0_29, %c0_30] : memref<7x32x32xf32, #tpu.memory_space<vmem>>, vector<1x32x32xf32>
    %39 = vector.shape_cast %38 : vector<1x32x32xf32> to vector<32x32xf32>
    %cst_31 = arith.constant dense<0.000000e+00> : vector<26x32xf32>
    %40 = tpu.matmul %37, %39, %cst_31 {dimension_numbers = #tpu.dot_dimension_numbers<[1], [0], [0], [1], [0, 0, 1, 1], [], []>} : vector<26x32xf32>, vector<32x32xf32>, vector<26x32xf32> -> vector<26x32xf32>
    %41 = arith.addf %36, %40 : vector<26x32xf32>
    %42 = vector.extract_strided_slice %20 {offsets = [4, 0], sizes = [26, 32], strides = [1, 1]} : vector<32x32xf32> to vector<26x32xf32>
    %c4_32 = arith.constant 4 : index
    %c0_33 = arith.constant 0 : index
    %c0_34 = arith.constant 0 : index
    %43 = vector.load %arg4[%c4_32, %c0_33, %c0_34] : memref<7x32x32xf32, #tpu.memory_space<vmem>>, vector<1x32x32xf32>
    %44 = vector.shape_cast %43 : vector<1x32x32xf32> to vector<32x32xf32>
    %cst_35 = arith.constant dense<0.000000e+00> : vector<26x32xf32>
    %45 = tpu.matmul %42, %44, %cst_35 {dimension_numbers = #tpu.dot_dimension_numbers<[1], [0], [0], [1], [0, 0, 1, 1], [], []>} : vector<26x32xf32>, vector<32x32xf32>, vector<26x32xf32> -> vector<26x32xf32>
    %46 = arith.addf %41, %45 : vector<26x32xf32>
    %47 = vector.extract_strided_slice %20 {offsets = [5, 0], sizes = [26, 32], strides = [1, 1]} : vector<32x32xf32> to vector<26x32xf32>
    %c5 = arith.constant 5 : index
    %c0_36 = arith.constant 0 : index
    %c0_37 = arith.constant 0 : index
    %48 = vector.load %arg4[%c5, %c0_36, %c0_37] : memref<7x32x32xf32, #tpu.memory_space<vmem>>, vector<1x32x32xf32>
    %49 = vector.shape_cast %48 : vector<1x32x32xf32> to vector<32x32xf32>
    %cst_38 = arith.constant dense<0.000000e+00> : vector<26x32xf32>
    %50 = tpu.matmul %47, %49, %cst_38 {dimension_numbers = #tpu.dot_dimension_numbers<[1], [0], [0], [1], [0, 0, 1, 1], [], []>} : vector<26x32xf32>, vector<32x32xf32>, vector<26x32xf32> -> vector<26x32xf32>
    %51 = arith.addf %46, %50 : vector<26x32xf32>
    %52 = vector.extract_strided_slice %20 {offsets = [6, 0], sizes = [26, 32], strides = [1, 1]} : vector<32x32xf32> to vector<26x32xf32>
    %c6 = arith.constant 6 : index
    %c0_39 = arith.constant 0 : index
    %c0_40 = arith.constant 0 : index
    %53 = vector.load %arg4[%c6, %c0_39, %c0_40] : memref<7x32x32xf32, #tpu.memory_space<vmem>>, vector<1x32x32xf32>
    %54 = vector.shape_cast %53 : vector<1x32x32xf32> to vector<32x32xf32>
    %cst_41 = arith.constant dense<0.000000e+00> : vector<26x32xf32>
    %55 = tpu.matmul %52, %54, %cst_41 {dimension_numbers = #tpu.dot_dimension_numbers<[1], [0], [0], [1], [0, 0, 1, 1], [], []>} : vector<26x32xf32>, vector<32x32xf32>, vector<26x32xf32> -> vector<26x32xf32>
    %56 = arith.addf %51, %55 : vector<26x32xf32>
    %57 = vector.broadcast %1 : vector<1x32xf32> to vector<26x32xf32>
    %58 = arith.addf %56, %57 : vector<26x32xf32>
    %cst_42 = arith.constant 0.000000e+00 : f32
    %59 = vector.broadcast %cst_42 : f32 to vector<26x32xf32>
    %60 = arith.maximumf %58, %59 : vector<26x32xf32>
    %61 = vector.extract_strided_slice %60 {offsets = [0, 0], sizes = [8, 32], strides = [1, 1]} : vector<26x32xf32> to vector<8x32xf32>
    %cst_43 = arith.constant dense<0xFF800000> : vector<32xf32>
    %62 = vector.multi_reduction <maximumf>, %61, %cst_43 [0] : vector<8x32xf32> to vector<32xf32>
    %63 = vector.shape_cast %62 : vector<32xf32> to vector<1x32xf32>
    %64 = vector.extract_strided_slice %60 {offsets = [16, 0], sizes = [8, 32], strides = [1, 1]} : vector<26x32xf32> to vector<8x32xf32>
    %cst_44 = arith.constant dense<0xFF800000> : vector<32xf32>
    %65 = vector.multi_reduction <maximumf>, %64, %cst_44 [0] : vector<8x32xf32> to vector<32xf32>
    %66 = vector.shape_cast %65 : vector<32xf32> to vector<1x32xf32>
    %67 = tpu.concatenate %63, %66 in 0 : vector<1x32xf32>, vector<1x32xf32> -> vector<2x32xf32>
    %68 = arith.mulf %11, %67 : vector<2x32xf32>
    %c0_45 = arith.constant 0 : index
    %c0_46 = arith.constant 0 : index
    %69 = vector.load %arg5[%c0_45, %c0_46] : memref<32x4xf32, #tpu.memory_space<vmem>>, vector<32x4xf32>
    %cst_47 = arith.constant dense<0.000000e+00> : vector<2x4xf32>
    %70 = tpu.matmul %68, %69, %cst_47 {dimension_numbers = #tpu.dot_dimension_numbers<[1], [0], [0], [1], [0, 0, 1, 1], [], []>} : vector<2x32xf32>, vector<32x4xf32>, vector<2x4xf32> -> vector<2x4xf32>
    %71 = vector.broadcast %2 : vector<1x4xf32> to vector<2x4xf32>
    %72 = arith.addf %70, %71 : vector<2x4xf32>
    %cst_48 = arith.constant 0.000000e+00 : f32
    %73 = vector.broadcast %cst_48 : f32 to vector<2x4xf32>
    %74 = arith.maximumf %72, %73 : vector<2x4xf32>
    %75 = vector.broadcast %3 : vector<1x4xf32> to vector<2x4xf32>
    %76 = arith.mulf %74, %75 : vector<2x4xf32>
    %cst_49 = arith.constant dense<0.000000e+00> : vector<2xf32>
    %77 = vector.multi_reduction <add>, %76, %cst_49 [1] : vector<2x4xf32> to vector<2xf32>
    %78 = vector.shape_cast %77 : vector<2xf32> to vector<2x1xf32>
    %79 = vector.broadcast %4 : vector<1x1xf32> to vector<2x1xf32>
    %80 = arith.addf %78, %79 : vector<2x1xf32>
    %81 = vector.shape_cast %80 : vector<2x1xf32> to vector<2x1xf32>
    %82 = vector.broadcast %81 : vector<2x1xf32> to vector<2x128xf32>
    %c0_50 = arith.constant 0 : index
    %c0_51 = arith.constant 0 : index
    %83 = vector.load %arg7[%c0_50, %c0_51] : memref<2x128xf32, #tpu.memory_space<vmem>>, vector<2x128xf32>
    tpu.vector_store %arg7[%c0_50, %c0_51], %82 {strides = array<i32>} : memref<2x128xf32, #tpu.memory_space<vmem>>, vector<2x128xf32>,
    return
  }
}

</mosaic_0001>

<llo_original>
// kernel: deepphylo_forward.1
$region0: #{deepphylo_forward.1}
  #allocation0 [shape = 'u32[]', space=smem, size = 0x4, offset = 0x4, fixed_abs, tag = 'smem constant byte address 0x4 - core index']
  #allocation1 [shape = 'u32[144,128]{1,0:T(1,128)}', space=vmem, size = 0x12000, scoped, tag = 'internal scratch']
  %s0 = inlined_call_operand.vmem [shape: f32[2,16], index: 0, kind: input, shape index: {}]
  %s1 = inlined_call_operand.vmem [shape: s32[32,1], index: 1, kind: input, shape index: {}]
  %s2 = inlined_call_operand.vmem [shape: f32[16,32], index: 2, kind: input, shape index: {}]
  %s3 = inlined_call_operand.vmem [shape: f32[17,32], index: 3, kind: input, shape index: {}]
  %s4 = inlined_call_operand.hbm [shape: f32[7,32,32], index: 4, kind: input, shape index: {}]
  %s5 = inlined_call_operand.vmem [shape: f32[32,4], index: 5, kind: input, shape index: {}]
  %s6 = inlined_call_operand.vmem [shape: f32[8,128], index: 6, kind: input, shape index: {}]
  %s7 = inlined_call_operand.vmem [shape: f32[2,128], index: 7, kind: output, shape index: {}]
  %s8 = sld [smem:[#allocation0]]
  $region42: #{deepphylo_forward.1} parent=0
    _
  %s10 = ssub.s32 1, %s8
  %s11 = scalar_select 0, %s10, %s8
  $region1: #{deepphylo_forward.1} parent=0
    #allocation2 [shape = 'u8[114688]{0}', space=vmem, size = 0x1c000, scoped, tag = 'input window, operand 4, single buffered']
    #allocation3 [shape = 's32[1]{0}', space=sflag, size = 0x4, scoped, tag = 'scoped memory for deepphylo_forward.1']
    %12 = vsyncpa [#allocation3], 0
    // Predicated region
    $region2: #{deepphylo_forward.1} parent=1 // pred_check
      _
    $region3: #{deepphylo_forward.1} parent=1 // pred_check_branch
      %14 = sbr.rel (0) target = $region5
    $region4: #{deepphylo_forward.1} parent=1 // pred_region
      _
    $region5: #{deepphylo_forward.1} parent=1 // pred_fallthru
      _
    // Predicated region
    $region6: #{deepphylo_forward.1} parent=1 // pred_check
      _
    $region7: #{deepphylo_forward.1} parent=1 // pred_check_branch
      %16 = sbr.rel (0) target = $region9
    $region8: #{deepphylo_forward.1} parent=1 // pred_region
      _
    $region9: #{deepphylo_forward.1} parent=1 // pred_fallthru
      _
    // Predicated region
    $region10: #{deepphylo_forward.1} parent=1 // pred_check
      _
    $region11: #{deepphylo_forward.1} parent=1 // pred_check_branch
      %18 = sbr.rel (0) target = $region13
    $region12: #{deepphylo_forward.1} parent=1 // pred_region
      _
    $region13: #{deepphylo_forward.1} parent=1 // pred_fallthru
      _
    // Predicated region
    $region14: #{deepphylo_forward.1} parent=1 // pred_check
      _
    $region15: #{deepphylo_forward.1} parent=1 // pred_check_branch
      %20 = sbr.rel (0) target = $region17
    $region16: #{deepphylo_forward.1} parent=1 // pred_region
      _
    $region17: #{deepphylo_forward.1} parent=1 // pred_fallthru
      _
    // Predicated region
    $region18: #{deepphylo_forward.1} parent=1 // pred_check
      _
    $region19: #{deepphylo_forward.1} parent=1 // pred_check_branch
      %22 = sbr.rel (0) target = $region21
    $region20: #{deepphylo_forward.1} parent=1 // pred_region
      %s24 = ssub.s32 3584, 3584
      %25 = vsyncadd [#allocation3], %s24
      %s26 = sshll.u32 [#allocation2], 4
      %s27 = int_to_ptr.vmem [resolvable:$true] %s26
      %32 = dma.hbm_to_vmem [thread:$0]  %s4, 3584, %s27, [#allocation3], 128, 128, 8
    $region21: #{deepphylo_forward.1} parent=1 // pred_fallthru
      _
    // Predicated region
    $region22: #{deepphylo_forward.1} parent=1 // pred_check
      _
    $region23: #{deepphylo_forward.1} parent=1 // pred_check_branch
      %34 = sbr.rel (0) target = $region25
    $region24: #{deepphylo_forward.1} parent=1 // pred_region
      _
    $region25: #{deepphylo_forward.1} parent=1 // pred_fallthru
      _
    // Predicated region
    $region26: #{deepphylo_forward.1} parent=1 // pred_check
      _
    $region27: #{deepphylo_forward.1} parent=1 // pred_check_branch
      %36 = sbr.rel (0) target = $region29
    $region28: #{deepphylo_forward.1} parent=1 // pred_region
      _
    $region29: #{deepphylo_forward.1} parent=1 // pred_fallthru
      _
    // Predicated region
    $region30: #{deepphylo_forward.1} parent=1 // pred_check
      _
    $region31: #{deepphylo_forward.1} parent=1 // pred_check_branch
      %38 = sbr.rel (0) target = $region33
    $region32: #{deepphylo_forward.1} parent=1 // pred_region
      %39 = dma.done [#allocation3], 3584
    $region33: #{deepphylo_forward.1} parent=1 // pred_fallthru
      _
    %v40 = vld [vmem:[%s6] sm:$0x1]
    %v41 = vld [vmem:[%s6 + $0x1] sm:$0x1]
    %v42 = vld [vmem:[%s6 + $0x2] sm:$0x1]
    %v43 = vld [vmem:[%s6 + $0x3] sm:$0x1]
    %v44 = vld [vmem:[%s6 + $0x4] sm:$0x1]
    %v45 = vld [vmem:[%s0] sm:$0x3]
    %v46 = vld [vmem:[%s2] sm:$0xff]
    %v47 = vld [vmem:[%s2 + $0x8] sm:$0xff]
    %v48 = vlaneseq
    %v49 = vshrl.u32 %v48, 7
    %v50 = vsub.s32 0, %v49
    %v51 = vrot.slane %v40, %v50
    %vm52 = vcmask 130048
    %v54 = vsel %vm52, %v45, 0
    %56 = vmatprep.subr.mxu0 0.0
    %57 = vmatpush1.msra.mxu0 0.0
    %58 = vmatprep.subr.mxu0 0.0
    %59 = vmatpush1.msra.mxu0 0.0
    %60 = vmatprep.subr.mxu0 0.0
    %61 = vmatpush1.msra.mxu0 0.0
    %62 = vmatprep.subr.mxu0 0.0
    %63 = vmatpush1.msra.mxu0 0.0
    %64 = vmatprep.subr.mxu0 0.0
    %65 = vmatpush1.msra.mxu0 0.0
    %66 = vmatprep.subr.mxu0 0.0
    %67 = vmatpush1.msra.mxu0 0.0
    %68 = vmatprep.subr.mxu0 0.0
    %69 = vmatpush1.msra.mxu0 0.0
    %70 = vmatprep.subr.mxu0 0.0
    %71 = vmatpush1.msra.mxu0 0.0
    %72 = vmatprep.subr.mxu0 0.0
    %73 = vmatpush1.msra.mxu0 0.0
    %74 = vmatprep.subr.mxu0 0.0
    %75 = vmatpush1.msra.mxu0 0.0
    %76 = vmatprep.subr.mxu0 0.0
    %77 = vmatpush1.msra.mxu0 0.0
    %78 = vmatprep.subr.mxu0 0.0
    %79 = vmatpush1.msra.mxu0 0.0
    %80 = vmatprep.subr.mxu0 0.0
    %81 = vmatpush1.msra.mxu0 0.0
    %82 = vmatprep.subr.mxu0 0.0
    %83 = vmatpush1.msra.mxu0 0.0
    %84 = vmatprep.subr.mxu0 0.0
    %85 = vmatpush1.msra.mxu0 %v47
    %86 = vmatprep.subr.mxu0 0.0
    %87 = vmatpush1.msra.mxu0 %v46
    %88 = vmatprep.subr.mxu0 0.0
    %89 = vmatpush2.msra.mxu0 0.0
    %90 = vmatprep.subr.mxu0 0.0
    %91 = vmatpush2.msra.mxu0 0.0
    %92 = vmatprep.subr.mxu0 0.0
    %93 = vmatpush2.msra.mxu0 0.0
    %94 = vmatprep.subr.mxu0 0.0
    %95 = vmatpush2.msra.mxu0 0.0
    %96 = vmatprep.subr.mxu0 0.0
    %97 = vmatpush2.msra.mxu0 0.0
    %98 = vmatprep.subr.mxu0 0.0
    %99 = vmatpush2.msra.mxu0 0.0
    %100 = vmatprep.subr.mxu0 0.0
    %101 = vmatpush2.msra.mxu0 0.0
    %102 = vmatprep.subr.mxu0 0.0
    %103 = vmatpush2.msra.mxu0 0.0
    %104 = vmatprep.subr.mxu0 0.0
    %105 = vmatpush2.msra.mxu0 0.0
    %106 = vmatprep.subr.mxu0 0.0
    %107 = vmatpush2.msra.mxu0 0.0
    %108 = vmatprep.subr.mxu0 0.0
    %109 = vmatpush2.msra.mxu0 0.0
    %110 = vmatprep.subr.mxu0 0.0
    %111 = vmatpush2.msra.mxu0 0.0
    %112 = vmatprep.subr.mxu0 0.0
    %113 = vmatpush2.msra.mxu0 0.0
    %114 = vmatprep.subr.mxu0 0.0
    %115 = vmatpush2.msra.mxu0 0.0
    %116 = vmatprep.subr.mxu0 0.0
    %117 = vmatpush2.msra.mxu0 0.0
    %118 = vmatprep.subr.mxu0 0.0
    %119 = vmatpush2.msra.mxu0 0.0
    %120 = vmatprep.mubr.f32.mxu0 0.0
    %121 = vmatmul.mubr.f32.gmra.mxu0 %v54
    %v122 = vpop.f32.mrf.mxu0
    %v123 = vadd.f32 %v51, %v122
    %v124 = vpop.f32.mrf.mxu0
    %125 = vdwg.mxu0
    %v126 = vmax.f32 %v123, 0.0
    %v127 = vld [vmem:[%s1] sm:$0xff]
    %v128 = vld [vmem:[%s1 + $0x8] sm:$0xff]
    %v129 = vld [vmem:[%s1 + $0x10] sm:$0xff]
    %v130 = vld [vmem:[%s1 + $0x18] sm:$0xff]
    %v131 = vlaneseq
    %v132 = vand.u32 %v131, 127
    %133 = vset.pattern.permute.xlu0 0
    %134 = vperm.xlu0 %133, %v127
    %v135 = vpop.permute.xlu0 %134
    %136 = vset.pattern.permute.xlu0 0
    %137 = vperm.xlu0 %136, %v128
    %v138 = vpop.permute.xlu0 %137
    %139 = vset.pattern.permute.xlu0 0
    %140 = vperm.xlu0 %139, %v129
    %v141 = vpop.permute.xlu0 %140
    %142 = vset.pattern.permute.xlu0 0
    %143 = vperm.xlu0 %142, %v130
    %v144 = vpop.permute.xlu0 %143
    %vm145 = vcmp.eq.s32.totalorder %v135, %v132
    %vm146 = vcmp.eq.s32.totalorder %v138, %v132
    %vm147 = vcmp.eq.s32.totalorder %v141, %v132
    %vm148 = vcmp.eq.s32.totalorder %v144, %v132
    %v149 = vsel %vm145, 1, 0
    %v150 = vsel %vm146, 1, 0
    %v151 = vsel %vm147, 1, 0
    %v152 = vsel %vm148, 1, 0
    %v153 = vcvt.s32.f32 %v149
    %v154 = vcvt.s32.f32 %v150
    %v155 = vcvt.s32.f32 %v151
    %v156 = vcvt.s32.f32 %v152
    %v157 = vld [vmem:[%s3] sm:$0xff]
    %v158 = vld [vmem:[%s3 + $0x8] sm:$0xff]
    %v159 = vld [vmem:[%s3 + $0x10] sm:$0x1]
    %vm160 = vcmask 138240
    %v162 = vsel %vm160, %v153, 0
    %v165 = vsel %vm160, %v154, 0
    %v168 = vsel %vm160, %v155, 0
    %v171 = vsel %vm160, %v156, 0
    %vm173 = vcmask 1040384
    %v175 = vsel %vm173, %v159, 0
    %177 = vmatprep.subr.mxu0 0.0
    %178 = vmatpush1.msra.mxu0 0.0
    %179 = vmatprep.subr.mxu0 0.0
    %180 = vmatpush1.msra.mxu0 0.0
    %181 = vmatprep.subr.mxu0 0.0
    %182 = vmatpush1.msra.mxu0 0.0
    %183 = vmatprep.subr.mxu0 0.0
    %184 = vmatpush1.msra.mxu0 0.0
    %185 = vmatprep.subr.mxu0 0.0
    %186 = vmatpush1.msra.mxu0 0.0
    %187 = vmatprep.subr.mxu0 0.0
    %188 = vmatpush1.msra.mxu0 0.0
    %189 = vmatprep.subr.mxu0 0.0
    %190 = vmatpush1.msra.mxu0 0.0
    %191 = vmatprep.subr.mxu0 0.0
    %192 = vmatpush1.msra.mxu0 0.0
    %193 = vmatprep.subr.mxu0 0.0
    %194 = vmatpush1.msra.mxu0 0.0
    %195 = vmatprep.subr.mxu0 0.0
    %196 = vmatpush1.msra.mxu0 0.0
    %197 = vmatprep.subr.mxu0 0.0
    %198 = vmatpush1.msra.mxu0 0.0
    %199 = vmatprep.subr.mxu0 0.0
    %200 = vmatpush1.msra.mxu0 0.0
    %201 = vmatprep.subr.mxu0 0.0
    %202 = vmatpush1.msra.mxu0 0.0
    %203 = vmatprep.subr.mxu0 0.0
    %204 = vmatpush1.msra.mxu0 %v175
    %205 = vmatprep.subr.mxu0 0.0
    %206 = vmatpush1.msra.mxu0 %v158
    %207 = vmatprep.subr.mxu0 0.0
    %208 = vmatpush1.msra.mxu0 %v157
    %209 = vmatprep.subr.mxu0 0.0
    %210 = vmatpush2.msra.mxu0 0.0
    %211 = vmatprep.subr.mxu0 0.0
    %212 = vmatpush2.msra.mxu0 0.0
    %213 = vmatprep.subr.mxu0 0.0
    %214 = vmatpush2.msra.mxu0 0.0
    %215 = vmatprep.subr.mxu0 0.0
    %216 = vmatpush2.msra.mxu0 0.0
    %217 = vmatprep.subr.mxu0 0.0
    %218 = vmatpush2.msra.mxu0 0.0
    %219 = vmatprep.subr.mxu0 0.0
    %220 = vmatpush2.msra.mxu0 0.0
    %221 = vmatprep.subr.mxu0 0.0
    %222 = vmatpush2.msra.mxu0 0.0
    %223 = vmatprep.subr.mxu0 0.0
    %224 = vmatpush2.msra.mxu0 0.0
    %225 = vmatprep.subr.mxu0 0.0
    %226 = vmatpush2.msra.mxu0 0.0
    %227 = vmatprep.subr.mxu0 0.0
    %228 = vmatpush2.msra.mxu0 0.0
    %229 = vmatprep.subr.mxu0 0.0
    %230 = vmatpush2.msra.mxu0 0.0
    %231 = vmatprep.subr.mxu0 0.0
    %232 = vmatpush2.msra.mxu0 0.0
    %233 = vmatprep.subr.mxu0 0.0
    %234 = vmatpush2.msra.mxu0 0.0
    %235 = vmatprep.subr.mxu0 0.0
    %236 = vmatpush2.msra.mxu0 0.0
    %237 = vmatprep.subr.mxu0 0.0
    %238 = vmatpush2.msra.mxu0 0.0
    %239 = vmatprep.subr.mxu0 0.0
    %240 = vmatpush2.msra.mxu0 0.0
    %241 = vmatprep.mubr.f32.mxu0 0.0
    %242 = vmatmul.mubr.f32.gmra.mxu0 %v162
    %v243 = vpop.f32.mrf.mxu0
    %v244 = vadd.f32 0.0, %v243
    %v245 = vpop.f32.mrf.mxu0
    %246 = vmatprep.mubr.f32.mxu0 0.0
    %247 = vmatmul.mubr.f32.gmra.mxu0 %v165
    %v248 = vpop.f32.mrf.mxu0
    %v249 = vadd.f32 0.0, %v248
    %v250 = vpop.f32.mrf.mxu0
    %251 = vmatprep.mubr.f32.mxu0 0.0
    %252 = vmatmul.mubr.f32.gmra.mxu0 %v168
    %v253 = vpop.f32.mrf.mxu0
    %v254 = vadd.f32 0.0, %v253
    %v255 = vpop.f32.mrf.mxu0
    %256 = vmatprep.mubr.f32.mxu0 0.0
    %257 = vmatmul.mubr.f32.gmra.mxu0 %v171
    %v258 = vpop.f32.mrf.mxu0
    %v259 = vadd.f32 0.0, %v258
    %v260 = vpop.f32.mrf.mxu0
    %261 = vdwg.mxu0
    %v262 = vld [vmem:[#allocation2] sm:$0xff]
    %v263 = vld [vmem:[#allocation2 + $0x8] sm:$0xff]
    %v264 = vld [vmem:[#allocation2 + $0x10] sm:$0xff]
    %v265 = vld [vmem:[#allocation2 + $0x18] sm:$0xff]
    %s266 = scalar_lea.vmem [#allocation2], 32
    %v267 = vld [vmem:[%s266] sm:$0xff]
    %v268 = vld [vmem:[%s266 + $0x8] sm:$0xff]
    %v269 = vld [vmem:[%s266 + $0x10] sm:$0xff]
    %v270 = vld [vmem:[%s266 + $0x18] sm:$0xff]
    %vm275 = vcmask 1046528
    %v276 = vrot.slane %v244, 1
    %v277 = vrot.slane %v249, 1
    %v278 = vsel %vm275, %v276, %v277
    %v279 = vrot.slane %v254, 1
    %v280 = vsel %vm275, %v277, %v279
    %v281 = vrot.slane %v259, 1
    %v282 = vsel %vm275, %v279, %v281
    %vm283 = vcmask 261120
    %v284 = vsel %vm283, %v278, 0
    %v286 = vsel %vm283, %v280, 0
    %v288 = vsel %vm283, %v282, 0
    %v290 = vsel %vm283, %v281, 0
    %292 = vmatprep.subr.mxu0 0.0
    %293 = vmatpush1.msra.mxu0 0.0
    %294 = vmatprep.subr.mxu0 0.0
    %295 = vmatpush1.msra.mxu0 0.0
    %296 = vmatprep.subr.mxu0 0.0
    %297 = vmatpush1.msra.mxu0 0.0
    %298 = vmatprep.subr.mxu0 0.0
    %299 = vmatpush1.msra.mxu0 0.0
    %300 = vmatprep.subr.mxu0 0.0
    %301 = vmatpush1.msra.mxu0 0.0
    %302 = vmatprep.subr.mxu0 0.0
    %303 = vmatpush1.msra.mxu0 0.0
    %304 = vmatprep.subr.mxu0 0.0
    %305 = vmatpush1.msra.mxu0 0.0
    %306 = vmatprep.subr.mxu0 0.0
    %307 = vmatpush1.msra.mxu0 0.0
    %308 = vmatprep.subr.mxu0 0.0
    %309 = vmatpush1.msra.mxu0 0.0
    %310 = vmatprep.subr.mxu0 0.0
    %311 = vmatpush1.msra.mxu0 0.0
    %312 = vmatprep.subr.mxu0 0.0
    %313 = vmatpush1.msra.mxu0 0.0
    %314 = vmatprep.subr.mxu0 0.0
    %315 = vmatpush1.msra.mxu0 0.0
    %316 = vmatprep.subr.mxu0 0.0
    %317 = vmatpush1.msra.mxu0 %v270
    %318 = vmatprep.subr.mxu0 0.0
    %319 = vmatpush1.msra.mxu0 %v269
    %320 = vmatprep.subr.mxu0 0.0
    %321 = vmatpush1.msra.mxu0 %v268
    %322 = vmatprep.subr.mxu0 0.0
    %323 = vmatpush1.msra.mxu0 %v267
    %324 = vmatprep.subr.mxu0 0.0
    %325 = vmatpush2.msra.mxu0 0.0
    %326 = vmatprep.subr.mxu0 0.0
    %327 = vmatpush2.msra.mxu0 0.0
    %328 = vmatprep.subr.mxu0 0.0
    %329 = vmatpush2.msra.mxu0 0.0
    %330 = vmatprep.subr.mxu0 0.0
    %331 = vmatpush2.msra.mxu0 0.0
    %332 = vmatprep.subr.mxu0 0.0
    %333 = vmatpush2.msra.mxu0 0.0
    %334 = vmatprep.subr.mxu0 0.0
    %335 = vmatpush2.msra.mxu0 0.0
    %336 = vmatprep.subr.mxu0 0.0
    %337 = vmatpush2.msra.mxu0 0.0
    %338 = vmatprep.subr.mxu0 0.0
    %339 = vmatpush2.msra.mxu0 0.0
    %340 = vmatprep.subr.mxu0 0.0
    %341 = vmatpush2.msra.mxu0 0.0
    %342 = vmatprep.subr.mxu0 0.0
    %343 = vmatpush2.msra.mxu0 0.0
    %344 = vmatprep.subr.mxu0 0.0
    %345 = vmatpush2.msra.mxu0 0.0
    %346 = vmatprep.subr.mxu0 0.0
    %347 = vmatpush2.msra.mxu0 0.0
    %348 = vmatprep.subr.mxu0 0.0
    %349 = vmatpush2.msra.mxu0 0.0
    %350 = vmatprep.subr.mxu0 0.0
    %351 = vmatpush2.msra.mxu0 0.0
    %352 = vmatprep.subr.mxu0 0.0
    %353 = vmatpush2.msra.mxu0 0.0
    %354 = vmatprep.subr.mxu0 0.0
    %355 = vmatpush2.msra.mxu0 0.0
    %356 = vmatprep.mubr.f32.mxu0 0.0
    %357 = vmatmul.mubr.f32.gmra.mxu0 %v284
    %v358 = vpop.f32.mrf.mxu0
    %v359 = vadd.f32 0.0, %v358
    %v360 = vpop.f32.mrf.mxu0
    %361 = vmatprep.mubr.f32.mxu0 0.0
    %362 = vmatmul.mubr.f32.gmra.mxu0 %v286
    %v363 = vpop.f32.mrf.mxu0
    %v364 = vpop.f32.mrf.mxu0
    %365 = vmatprep.mubr.f32.mxu0 0.0
    %366 = vmatmul.mubr.f32.gmra.mxu0 %v288
    %v367 = vpop.f32.mrf.mxu0
    %v368 = vadd.f32 0.0, %v367
    %v369 = vpop.f32.mrf.mxu0
    %370 = vmatprep.mubr.f32.mxu0 0.0
    %371 = vmatmul.mubr.f32.gmra.mxu0 %v290
    %v372 = vpop.f32.mrf.mxu0
    %v373 = vpop.f32.mrf.mxu0
    %374 = vdwg.mxu0
    %v375 = vsel %vm283, %v244, 0
    %v377 = vsel %vm283, %v249, 0
    %v379 = vsel %vm283, %v254, 0
    %v381 = vsel %vm283, %v259, 0
    %383 = vmatprep.subr.mxu0 0.0
    %384 = vmatpush1.msra.mxu0 0.0
    %385 = vmatprep.subr.mxu0 0.0
    %386 = vmatpush1.msra.mxu0 0.0
    %387 = vmatprep.subr.mxu0 0.0
    %388 = vmatpush1.msra.mxu0 0.0
    %389 = vmatprep.subr.mxu0 0.0
    %390 = vmatpush1.msra.mxu0 0.0
    %391 = vmatprep.subr.mxu0 0.0
    %392 = vmatpush1.msra.mxu0 0.0
    %393 = vmatprep.subr.mxu0 0.0
    %394 = vmatpush1.msra.mxu0 0.0
    %395 = vmatprep.subr.mxu0 0.0
    %396 = vmatpush1.msra.mxu0 0.0
    %397 = vmatprep.subr.mxu0 0.0
    %398 = vmatpush1.msra.mxu0 0.0
    %399 = vmatprep.subr.mxu0 0.0
    %400 = vmatpush1.msra.mxu0 0.0
    %401 = vmatprep.subr.mxu0 0.0
    %402 = vmatpush1.msra.mxu0 0.0
    %403 = vmatprep.subr.mxu0 0.0
    %404 = vmatpush1.msra.mxu0 0.0
    %405 = vmatprep.subr.mxu0 0.0
    %406 = vmatpush1.msra.mxu0 0.0
    %407 = vmatprep.subr.mxu0 0.0
    %408 = vmatpush1.msra.mxu0 %v265
    %409 = vmatprep.subr.mxu0 0.0
    %410 = vmatpush1.msra.mxu0 %v264
    %411 = vmatprep.subr.mxu0 0.0
    %412 = vmatpush1.msra.mxu0 %v263
    %413 = vmatprep.subr.mxu0 0.0
    %414 = vmatpush1.msra.mxu0 %v262
    %415 = vmatprep.subr.mxu0 0.0
    %416 = vmatpush2.msra.mxu0 0.0
    %417 = vmatprep.subr.mxu0 0.0
    %418 = vmatpush2.msra.mxu0 0.0
    %419 = vmatprep.subr.mxu0 0.0
    %420 = vmatpush2.msra.mxu0 0.0
    %421 = vmatprep.subr.mxu0 0.0
    %422 = vmatpush2.msra.mxu0 0.0
    %423 = vmatprep.subr.mxu0 0.0
    %424 = vmatpush2.msra.mxu0 0.0
    %425 = vmatprep.subr.mxu0 0.0
    %426 = vmatpush2.msra.mxu0 0.0
    %427 = vmatprep.subr.mxu0 0.0
    %428 = vmatpush2.msra.mxu0 0.0
    %429 = vmatprep.subr.mxu0 0.0
    %430 = vmatpush2.msra.mxu0 0.0
    %431 = vmatprep.subr.mxu0 0.0
    %432 = vmatpush2.msra.mxu0 0.0
    %433 = vmatprep.subr.mxu0 0.0
    %434 = vmatpush2.msra.mxu0 0.0
    %435 = vmatprep.subr.mxu0 0.0
    %436 = vmatpush2.msra.mxu0 0.0
    %437 = vmatprep.subr.mxu0 0.0
    %438 = vmatpush2.msra.mxu0 0.0
    %439 = vmatprep.subr.mxu0 0.0
    %440 = vmatpush2.msra.mxu0 0.0
    %441 = vmatprep.subr.mxu0 0.0
    %442 = vmatpush2.msra.mxu0 0.0
    %443 = vmatprep.subr.mxu0 0.0
    %444 = vmatpush2.msra.mxu0 0.0
    %445 = vmatprep.subr.mxu0 0.0
    %446 = vmatpush2.msra.mxu0 0.0
    %447 = vmatprep.mubr.f32.mxu0 0.0
    %448 = vmatmul.mubr.f32.gmra.mxu0 %v375
    %v449 = vpop.f32.mrf.mxu0
    %v450 = vadd.f32 %v359, %v449
    %v451 = vpop.f32.mrf.mxu0
    %452 = vmatprep.mubr.f32.mxu0 0.0
    %453 = vmatmul.mubr.f32.gmra.mxu0 %v377
    %v454 = vpop.f32.mrf.mxu0
    %v455 = vpop.f32.mrf.mxu0
    %456 = vmatprep.mubr.f32.mxu0 0.0
    %457 = vmatmul.mubr.f32.gmra.mxu0 %v379
    %v458 = vpop.f32.mrf.mxu0
    %v459 = vadd.f32 %v368, %v458
    %v460 = vpop.f32.mrf.mxu0
    %461 = vmatprep.mubr.f32.mxu0 0.0
    %462 = vmatmul.mubr.f32.gmra.mxu0 %v381
    %v463 = vpop.f32.mrf.mxu0
    %v464 = vpop.f32.mrf.mxu0
    %465 = vdwg.mxu0
    %s466 = scalar_lea.vmem [#allocation2], 64
    %v467 = vld [vmem:[%s466] sm:$0xff]
    %v468 = vld [vmem:[%s466 + $0x8] sm:$0xff]
    %v469 = vld [vmem:[%s466 + $0x10] sm:$0xff]
    %v470 = vld [vmem:[%s466 + $0x18] sm:$0xff]
    %vm471 = vcmask 1045504
    %v472 = vrot.slane %v244, 2
    %v473 = vrot.slane %v249, 2
    %v474 = vsel %vm471, %v472, %v473
    %v475 = vrot.slane %v254, 2
    %v476 = vsel %vm471, %v473, %v475
    %v477 = vrot.slane %v259, 2
    %v478 = vsel %vm471, %v475, %v477
    %v479 = vsel %vm283, %v474, 0
    %v481 = vsel %vm283, %v476, 0
    %v483 = vsel %vm283, %v478, 0
    %v485 = vsel %vm283, %v477, 0
    %487 = vmatprep.subr.mxu0 0.0
    %488 = vmatpush1.msra.mxu0 0.0
    %489 = vmatprep.subr.mxu0 0.0
    %490 = vmatpush1.msra.mxu0 0.0
    %491 = vmatprep.subr.mxu0 0.0
    %492 = vmatpush1.msra.mxu0 0.0
    %493 = vmatprep.subr.mxu0 0.0
    %494 = vmatpush1.msra.mxu0 0.0
    %495 = vmatprep.subr.mxu0 0.0
    %496 = vmatpush1.msra.mxu0 0.0
    %497 = vmatprep.subr.mxu0 0.0
    %498 = vmatpush1.msra.mxu0 0.0
    %499 = vmatprep.subr.mxu0 0.0
    %500 = vmatpush1.msra.mxu0 0.0
    %501 = vmatprep.subr.mxu0 0.0
    %502 = vmatpush1.msra.mxu0 0.0
    %503 = vmatprep.subr.mxu0 0.0
    %504 = vmatpush1.msra.mxu0 0.0
    %505 = vmatprep.subr.mxu0 0.0
    %506 = vmatpush1.msra.mxu0 0.0
    %507 = vmatprep.subr.mxu0 0.0
    %508 = vmatpush1.msra.mxu0 0.0
    %509 = vmatprep.subr.mxu0 0.0
    %510 = vmatpush1.msra.mxu0 0.0
    %511 = vmatprep.subr.mxu0 0.0
    %512 = vmatpush1.msra.mxu0 %v470
    %513 = vmatprep.subr.mxu0 0.0
    %514 = vmatpush1.msra.mxu0 %v469
    %515 = vmatprep.subr.mxu0 0.0
    %516 = vmatpush1.msra.mxu0 %v468
    %517 = vmatprep.subr.mxu0 0.0
    %518 = vmatpush1.msra.mxu0 %v467
    %519 = vmatprep.subr.mxu0 0.0
    %520 = vmatpush2.msra.mxu0 0.0
    %521 = vmatprep.subr.mxu0 0.0
    %522 = vmatpush2.msra.mxu0 0.0
    %523 = vmatprep.subr.mxu0 0.0
    %524 = vmatpush2.msra.mxu0 0.0
    %525 = vmatprep.subr.mxu0 0.0
    %526 = vmatpush2.msra.mxu0 0.0
    %527 = vmatprep.subr.mxu0 0.0
    %528 = vmatpush2.msra.mxu0 0.0
    %529 = vmatprep.subr.mxu0 0.0
    %530 = vmatpush2.msra.mxu0 0.0
    %531 = vmatprep.subr.mxu0 0.0
    %532 = vmatpush2.msra.mxu0 0.0
    %533 = vmatprep.subr.mxu0 0.0
    %534 = vmatpush2.msra.mxu0 0.0
    %535 = vmatprep.subr.mxu0 0.0
    %536 = vmatpush2.msra.mxu0 0.0
    %537 = vmatprep.subr.mxu0 0.0
    %538 = vmatpush2.msra.mxu0 0.0
    %539 = vmatprep.subr.mxu0 0.0
    %540 = vmatpush2.msra.mxu0 0.0
    %541 = vmatprep.subr.mxu0 0.0
    %542 = vmatpush2.msra.mxu0 0.0
    %543 = vmatprep.subr.mxu0 0.0
    %544 = vmatpush2.msra.mxu0 0.0
    %545 = vmatprep.subr.mxu0 0.0
    %546 = vmatpush2.msra.mxu0 0.0
    %547 = vmatprep.subr.mxu0 0.0
    %548 = vmatpush2.msra.mxu0 0.0
    %549 = vmatprep.subr.mxu0 0.0
    %550 = vmatpush2.msra.mxu0 0.0
    %551 = vmatprep.mubr.f32.mxu0 0.0
    %552 = vmatmul.mubr.f32.gmra.mxu0 %v479
    %v553 = vpop.f32.mrf.mxu0
    %v554 = vadd.f32 0.0, %v553
    %v555 = vpop.f32.mrf.mxu0
    %556 = vmatprep.mubr.f32.mxu0 0.0
    %557 = vmatmul.mubr.f32.gmra.mxu0 %v481
    %v558 = vpop.f32.mrf.mxu0
    %v559 = vpop.f32.mrf.mxu0
    %560 = vmatprep.mubr.f32.mxu0 0.0
    %561 = vmatmul.mubr.f32.gmra.mxu0 %v483
    %v562 = vpop.f32.mrf.mxu0
    %v563 = vadd.f32 0.0, %v562
    %v564 = vpop.f32.mrf.mxu0
    %565 = vmatprep.mubr.f32.mxu0 0.0
    %566 = vmatmul.mubr.f32.gmra.mxu0 %v485
    %v567 = vpop.f32.mrf.mxu0
    %v568 = vpop.f32.mrf.mxu0
    %569 = vdwg.mxu0
    %v570 = vadd.f32 %v450, %v554
    %v571 = vadd.f32 %v459, %v563
    %s572 = scalar_lea.vmem [#allocation2], 96
    %v573 = vld [vmem:[%s572] sm:$0xff]
    %v574 = vld [vmem:[%s572 + $0x8] sm:$0xff]
    %v575 = vld [vmem:[%s572 + $0x10] sm:$0xff]
    %v576 = vld [vmem:[%s572 + $0x18] sm:$0xff]
    %vm577 = vcmask 1044480
    %v578 = vrot.slane %v244, 3
    %v579 = vrot.slane %v249, 3
    %v580 = vsel %vm577, %v578, %v579
    %v581 = vrot.slane %v254, 3
    %v582 = vsel %vm577, %v579, %v581
    %v583 = vrot.slane %v259, 3
    %v584 = vsel %vm577, %v581, %v583
    %v585 = vsel %vm283, %v580, 0
    %v587 = vsel %vm283, %v582, 0
    %v589 = vsel %vm283, %v584, 0
    %v591 = vsel %vm283, %v583, 0
    %593 = vmatprep.subr.mxu0 0.0
    %594 = vmatpush1.msra.mxu0 0.0
    %595 = vmatprep.subr.mxu0 0.0
    %596 = vmatpush1.msra.mxu0 0.0
    %597 = vmatprep.subr.mxu0 0.0
    %598 = vmatpush1.msra.mxu0 0.0
    %599 = vmatprep.subr.mxu0 0.0
    %600 = vmatpush1.msra.mxu0 0.0
    %601 = vmatprep.subr.mxu0 0.0
    %602 = vmatpush1.msra.mxu0 0.0
    %603 = vmatprep.subr.mxu0 0.0
    %604 = vmatpush1.msra.mxu0 0.0
    %605 = vmatprep.subr.mxu0 0.0
    %606 = vmatpush1.msra.mxu0 0.0
    %607 = vmatprep.subr.mxu0 0.0
    %608 = vmatpush1.msra.mxu0 0.0
    %609 = vmatprep.subr.mxu0 0.0
    %610 = vmatpush1.msra.mxu0 0.0
    %611 = vmatprep.subr.mxu0 0.0
    %612 = vmatpush1.msra.mxu0 0.0
    %613 = vmatprep.subr.mxu0 0.0
    %614 = vmatpush1.msra.mxu0 0.0
    %615 = vmatprep.subr.mxu0 0.0
    %616 = vmatpush1.msra.mxu0 0.0
    %617 = vmatprep.subr.mxu0 0.0
    %618 = vmatpush1.msra.mxu0 %v576
    %619 = vmatprep.subr.mxu0 0.0
    %620 = vmatpush1.msra.mxu0 %v575
    %621 = vmatprep.subr.mxu0 0.0
    %622 = vmatpush1.msra.mxu0 %v574
    %623 = vmatprep.subr.mxu0 0.0
    %624 = vmatpush1.msra.mxu0 %v573
    %625 = vmatprep.subr.mxu0 0.0
    %626 = vmatpush2.msra.mxu0 0.0
    %627 = vmatprep.subr.mxu0 0.0
    %628 = vmatpush2.msra.mxu0 0.0
    %629 = vmatprep.subr.mxu0 0.0
    %630 = vmatpush2.msra.mxu0 0.0
    %631 = vmatprep.subr.mxu0 0.0
    %632 = vmatpush2.msra.mxu0 0.0
    %633 = vmatprep.subr.mxu0 0.0
    %634 = vmatpush2.msra.mxu0 0.0
    %635 = vmatprep.subr.mxu0 0.0
    %636 = vmatpush2.msra.mxu0 0.0
    %637 = vmatprep.subr.mxu0 0.0
    %638 = vmatpush2.msra.mxu0 0.0
    %639 = vmatprep.subr.mxu0 0.0
    %640 = vmatpush2.msra.mxu0 0.0
    %641 = vmatprep.subr.mxu0 0.0
    %642 = vmatpush2.msra.mxu0 0.0
    %643 = vmatprep.subr.mxu0 0.0
    %644 = vmatpush2.msra.mxu0 0.0
    %645 = vmatprep.subr.mxu0 0.0
    %646 = vmatpush2.msra.mxu0 0.0
    %647 = vmatprep.subr.mxu0 0.0
    %648 = vmatpush2.msra.mxu0 0.0
    %649 = vmatprep.subr.mxu0 0.0
    %650 = vmatpush2.msra.mxu0 0.0
    %651 = vmatprep.subr.mxu0 0.0
    %652 = vmatpush2.msra.mxu0 0.0
    %653 = vmatprep.subr.mxu0 0.0
    %654 = vmatpush2.msra.mxu0 0.0
    %655 = vmatprep.subr.mxu0 0.0
    %656 = vmatpush2.msra.mxu0 0.0
    %657 = vmatprep.mubr.f32.mxu0 0.0
    %658 = vmatmul.mubr.f32.gmra.mxu0 %v585
    %v659 = vpop.f32.mrf.mxu0
    %v660 = vadd.f32 0.0, %v659
    %v661 = vpop.f32.mrf.mxu0
    %662 = vmatprep.mubr.f32.mxu0 0.0
    %663 = vmatmul.mubr.f32.gmra.mxu0 %v587
    %v664 = vpop.f32.mrf.mxu0
    %v665 = vpop.f32.mrf.mxu0
    %666 = vmatprep.mubr.f32.mxu0 0.0
    %667 = vmatmul.mubr.f32.gmra.mxu0 %v589
    %v668 = vpop.f32.mrf.mxu0
    %v669 = vadd.f32 0.0, %v668
    %v670 = vpop.f32.mrf.mxu0
    %671 = vmatprep.mubr.f32.mxu0 0.0
    %672 = vmatmul.mubr.f32.gmra.mxu0 %v591
    %v673 = vpop.f32.mrf.mxu0
    %v674 = vpop.f32.mrf.mxu0
    %675 = vdwg.mxu0
    %v676 = vadd.f32 %v570, %v660
    %v677 = vadd.f32 %v571, %v669
    %s678 = scalar_lea.vmem [#allocation2], 128
    %v679 = vld [vmem:[%s678] sm:$0xff]
    %v680 = vld [vmem:[%s678 + $0x8] sm:$0xff]
    %v681 = vld [vmem:[%s678 + $0x10] sm:$0xff]
    %v682 = vld [vmem:[%s678 + $0x18] sm:$0xff]
    %vm683 = vcmask 1043456
    %v684 = vrot.slane %v244, 4
    %v685 = vrot.slane %v249, 4
    %v686 = vsel %vm683, %v684, %v685
    %v687 = vrot.slane %v254, 4
    %v688 = vsel %vm683, %v685, %v687
    %v689 = vrot.slane %v259, 4
    %v690 = vsel %vm683, %v687, %v689
    %v691 = vsel %vm283, %v686, 0
    %v693 = vsel %vm283, %v688, 0
    %v695 = vsel %vm283, %v690, 0
    %v697 = vsel %vm283, %v689, 0
    %699 = vmatprep.subr.mxu0 0.0
    %700 = vmatpush1.msra.mxu0 0.0
    %701 = vmatprep.subr.mxu0 0.0
    %702 = vmatpush1.msra.mxu0 0.0
    %703 = vmatprep.subr.mxu0 0.0
    %704 = vmatpush1.msra.mxu0 0.0
    %705 = vmatprep.subr.mxu0 0.0
    %706 = vmatpush1.msra.mxu0 0.0
    %707 = vmatprep.subr.mxu0 0.0
    %708 = vmatpush1.msra.mxu0 0.0
    %709 = vmatprep.subr.mxu0 0.0
    %710 = vmatpush1.msra.mxu0 0.0
    %711 = vmatprep.subr.mxu0 0.0
    %712 = vmatpush1.msra.mxu0 0.0
    %713 = vmatprep.subr.mxu0 0.0
    %714 = vmatpush1.msra.mxu0 0.0
    %715 = vmatprep.subr.mxu0 0.0
    %716 = vmatpush1.msra.mxu0 0.0
    %717 = vmatprep.subr.mxu0 0.0
    %718 = vmatpush1.msra.mxu0 0.0
    %719 = vmatprep.subr.mxu0 0.0
    %720 = vmatpush1.msra.mxu0 0.0
    %721 = vmatprep.subr.mxu0 0.0
    %722 = vmatpush1.msra.mxu0 0.0
    %723 = vmatprep.subr.mxu0 0.0
    %724 = vmatpush1.msra.mxu0 %v682
    %725 = vmatprep.subr.mxu0 0.0
    %726 = vmatpush1.msra.mxu0 %v681
    %727 = vmatprep.subr.mxu0 0.0
    %728 = vmatpush1.msra.mxu0 %v680
    %729 = vmatprep.subr.mxu0 0.0
    %730 = vmatpush1.msra.mxu0 %v679
    %731 = vmatprep.subr.mxu0 0.0
    %732 = vmatpush2.msra.mxu0 0.0
    %733 = vmatprep.subr.mxu0 0.0
    %734 = vmatpush2.msra.mxu0 0.0
    %735 = vmatprep.subr.mxu0 0.0
    %736 = vmatpush2.msra.mxu0 0.0
    %737 = vmatprep.subr.mxu0 0.0
    %738 = vmatpush2.msra.mxu0 0.0
    %739 = vmatprep.subr.mxu0 0.0
    %740 = vmatpush2.msra.mxu0 0.0
    %741 = vmatprep.subr.mxu0 0.0
    %742 = vmatpush2.msra.mxu0 0.0
    %743 = vmatprep.subr.mxu0 0.0
    %744 = vmatpush2.msra.mxu0 0.0
    %745 = vmatprep.subr.mxu0 0.0
    %746 = vmatpush2.msra.mxu0 0.0
    %747 = vmatprep.subr.mxu0 0.0
    %748 = vmatpush2.msra.mxu0 0.0
    %749 = vmatprep.subr.mxu0 0.0
    %750 = vmatpush2.msra.mxu0 0.0
    %751 = vmatprep.subr.mxu0 0.0
    %752 = vmatpush2.msra.mxu0 0.0
    %753 = vmatprep.subr.mxu0 0.0
    %754 = vmatpush2.msra.mxu0 0.0
    %755 = vmatprep.subr.mxu0 0.0
    %756 = vmatpush2.msra.mxu0 0.0
    %757 = vmatprep.subr.mxu0 0.0
    %758 = vmatpush2.msra.mxu0 0.0
    %759 = vmatprep.subr.mxu0 0.0
    %760 = vmatpush2.msra.mxu0 0.0
    %761 = vmatprep.subr.mxu0 0.0
    %762 = vmatpush2.msra.mxu0 0.0
    %763 = vmatprep.mubr.f32.mxu0 0.0
    %764 = vmatmul.mubr.f32.gmra.mxu0 %v691
    %v765 = vpop.f32.mrf.mxu0
    %v766 = vadd.f32 0.0, %v765
    %v767 = vpop.f32.mrf.mxu0
    %768 = vmatprep.mubr.f32.mxu0 0.0
    %769 = vmatmul.mubr.f32.gmra.mxu0 %v693
    %v770 = vpop.f32.mrf.mxu0
    %v771 = vpop.f32.mrf.mxu0
    %772 = vmatprep.mubr.f32.mxu0 0.0
    %773 = vmatmul.mubr.f32.gmra.mxu0 %v695
    %v774 = vpop.f32.mrf.mxu0
    %v775 = vadd.f32 0.0, %v774
    %v776 = vpop.f32.mrf.mxu0
    %777 = vmatprep.mubr.f32.mxu0 0.0
    %778 = vmatmul.mubr.f32.gmra.mxu0 %v697
    %v779 = vpop.f32.mrf.mxu0
    %v780 = vpop.f32.mrf.mxu0
    %781 = vdwg.mxu0
    %v782 = vadd.f32 %v676, %v766
    %v783 = vadd.f32 %v677, %v775
    %s784 = scalar_lea.vmem [#allocation2], 160
    %v785 = vld [vmem:[%s784] sm:$0xff]
    %v786 = vld [vmem:[%s784 + $0x8] sm:$0xff]
    %v787 = vld [vmem:[%s784 + $0x10] sm:$0xff]
    %v788 = vld [vmem:[%s784 + $0x18] sm:$0xff]
    %vm789 = vcmask 1042432
    %v790 = vrot.slane %v244, 5
    %v791 = vrot.slane %v249, 5
    %v792 = vsel %vm789, %v790, %v791
    %v793 = vrot.slane %v254, 5
    %v794 = vsel %vm789, %v791, %v793
    %v795 = vrot.slane %v259, 5
    %v796 = vsel %vm789, %v793, %v795
    %v797 = vsel %vm283, %v792, 0
    %v799 = vsel %vm283, %v794, 0
    %v801 = vsel %vm283, %v796, 0
    %v803 = vsel %vm283, %v795, 0
    %805 = vmatprep.subr.mxu0 0.0
    %806 = vmatpush1.msra.mxu0 0.0
    %807 = vmatprep.subr.mxu0 0.0
    %808 = vmatpush1.msra.mxu0 0.0
    %809 = vmatprep.subr.mxu0 0.0
    %810 = vmatpush1.msra.mxu0 0.0
    %811 = vmatprep.subr.mxu0 0.0
    %812 = vmatpush1.msra.mxu0 0.0
    %813 = vmatprep.subr.mxu0 0.0
    %814 = vmatpush1.msra.mxu0 0.0
    %815 = vmatprep.subr.mxu0 0.0
    %816 = vmatpush1.msra.mxu0 0.0
    %817 = vmatprep.subr.mxu0 0.0
    %818 = vmatpush1.msra.mxu0 0.0
    %819 = vmatprep.subr.mxu0 0.0
    %820 = vmatpush1.msra.mxu0 0.0
    %821 = vmatprep.subr.mxu0 0.0
    %822 = vmatpush1.msra.mxu0 0.0
    %823 = vmatprep.subr.mxu0 0.0
    %824 = vmatpush1.msra.mxu0 0.0
    %825 = vmatprep.subr.mxu0 0.0
    %826 = vmatpush1.msra.mxu0 0.0
    %827 = vmatprep.subr.mxu0 0.0
    %828 = vmatpush1.msra.mxu0 0.0
    %829 = vmatprep.subr.mxu0 0.0
    %830 = vmatpush1.msra.mxu0 %v788
    %831 = vmatprep.subr.mxu0 0.0
    %832 = vmatpush1.msra.mxu0 %v787
    %833 = vmatprep.subr.mxu0 0.0
    %834 = vmatpush1.msra.mxu0 %v786
    %835 = vmatprep.subr.mxu0 0.0
    %836 = vmatpush1.msra.mxu0 %v785
    %837 = vmatprep.subr.mxu0 0.0
    %838 = vmatpush2.msra.mxu0 0.0
    %839 = vmatprep.subr.mxu0 0.0
    %840 = vmatpush2.msra.mxu0 0.0
    %841 = vmatprep.subr.mxu0 0.0
    %842 = vmatpush2.msra.mxu0 0.0
    %843 = vmatprep.subr.mxu0 0.0
    %844 = vmatpush2.msra.mxu0 0.0
    %845 = vmatprep.subr.mxu0 0.0
    %846 = vmatpush2.msra.mxu0 0.0
    %847 = vmatprep.subr.mxu0 0.0
    %848 = vmatpush2.msra.mxu0 0.0
    %849 = vmatprep.subr.mxu0 0.0
    %850 = vmatpush2.msra.mxu0 0.0
    %851 = vmatprep.subr.mxu0 0.0
    %852 = vmatpush2.msra.mxu0 0.0
    %853 = vmatprep.subr.mxu0 0.0
    %854 = vmatpush2.msra.mxu0 0.0
    %855 = vmatprep.subr.mxu0 0.0
    %856 = vmatpush2.msra.mxu0 0.0
    %857 = vmatprep.subr.mxu0 0.0
    %858 = vmatpush2.msra.mxu0 0.0
    %859 = vmatprep.subr.mxu0 0.0
    %860 = vmatpush2.msra.mxu0 0.0
    %861 = vmatprep.subr.mxu0 0.0
    %862 = vmatpush2.msra.mxu0 0.0
    %863 = vmatprep.subr.mxu0 0.0
    %864 = vmatpush2.msra.mxu0 0.0
    %865 = vmatprep.subr.mxu0 0.0
    %866 = vmatpush2.msra.mxu0 0.0
    %867 = vmatprep.subr.mxu0 0.0
    %868 = vmatpush2.msra.mxu0 0.0
    %869 = vmatprep.mubr.f32.mxu0 0.0
    %870 = vmatmul.mubr.f32.gmra.mxu0 %v797
    %v871 = vpop.f32.mrf.mxu0
    %v872 = vadd.f32 0.0, %v871
    %v873 = vpop.f32.mrf.mxu0
    %874 = vmatprep.mubr.f32.mxu0 0.0
    %875 = vmatmul.mubr.f32.gmra.mxu0 %v799
    %v876 = vpop.f32.mrf.mxu0
    %v877 = vpop.f32.mrf.mxu0
    %878 = vmatprep.mubr.f32.mxu0 0.0
    %879 = vmatmul.mubr.f32.gmra.mxu0 %v801
    %v880 = vpop.f32.mrf.mxu0
    %v881 = vadd.f32 0.0, %v880
    %v882 = vpop.f32.mrf.mxu0
    %883 = vmatprep.mubr.f32.mxu0 0.0
    %884 = vmatmul.mubr.f32.gmra.mxu0 %v803
    %v885 = vpop.f32.mrf.mxu0
    %v886 = vpop.f32.mrf.mxu0
    %887 = vdwg.mxu0
    %v888 = vadd.f32 %v782, %v872
    %v889 = vadd.f32 %v783, %v881
    %s890 = scalar_lea.vmem [#allocation2], 192
    %v891 = vld [vmem:[%s890] sm:$0xff]
    %v892 = vld [vmem:[%s890 + $0x8] sm:$0xff]
    %v893 = vld [vmem:[%s890 + $0x10] sm:$0xff]
    %v894 = vld [vmem:[%s890 + $0x18] sm:$0xff]
    %vm895 = vcmask 1041408
    %v896 = vrot.slane %v244, 6
    %v897 = vrot.slane %v249, 6
    %v898 = vsel %vm895, %v896, %v897
    %v899 = vrot.slane %v254, 6
    %v900 = vsel %vm895, %v897, %v899
    %v901 = vrot.slane %v259, 6
    %v902 = vsel %vm895, %v899, %v901
    %v903 = vsel %vm283, %v898, 0
    %v905 = vsel %vm283, %v900, 0
    %v907 = vsel %vm283, %v902, 0
    %v909 = vsel %vm283, %v901, 0
    %911 = vmatprep.subr.mxu0 0.0
    %912 = vmatpush1.msra.mxu0 0.0
    %913 = vmatprep.subr.mxu0 0.0
    %914 = vmatpush1.msra.mxu0 0.0
    %915 = vmatprep.subr.mxu0 0.0
    %916 = vmatpush1.msra.mxu0 0.0
    %917 = vmatprep.subr.mxu0 0.0
    %918 = vmatpush1.msra.mxu0 0.0
    %919 = vmatprep.subr.mxu0 0.0
    %920 = vmatpush1.msra.mxu0 0.0
    %921 = vmatprep.subr.mxu0 0.0
    %922 = vmatpush1.msra.mxu0 0.0
    %923 = vmatprep.subr.mxu0 0.0
    %924 = vmatpush1.msra.mxu0 0.0
    %925 = vmatprep.subr.mxu0 0.0
    %926 = vmatpush1.msra.mxu0 0.0
    %927 = vmatprep.subr.mxu0 0.0
    %928 = vmatpush1.msra.mxu0 0.0
    %929 = vmatprep.subr.mxu0 0.0
    %930 = vmatpush1.msra.mxu0 0.0
    %931 = vmatprep.subr.mxu0 0.0
    %932 = vmatpush1.msra.mxu0 0.0
    %933 = vmatprep.subr.mxu0 0.0
    %934 = vmatpush1.msra.mxu0 0.0
    %935 = vmatprep.subr.mxu0 0.0
    %936 = vmatpush1.msra.mxu0 %v894
    %937 = vmatprep.subr.mxu0 0.0
    %938 = vmatpush1.msra.mxu0 %v893
    %939 = vmatprep.subr.mxu0 0.0
    %940 = vmatpush1.msra.mxu0 %v892
    %941 = vmatprep.subr.mxu0 0.0
    %942 = vmatpush1.msra.mxu0 %v891
    %943 = vmatprep.subr.mxu0 0.0
    %944 = vmatpush2.msra.mxu0 0.0
    %945 = vmatprep.subr.mxu0 0.0
    %946 = vmatpush2.msra.mxu0 0.0
    %947 = vmatprep.subr.mxu0 0.0
    %948 = vmatpush2.msra.mxu0 0.0
    %949 = vmatprep.subr.mxu0 0.0
    %950 = vmatpush2.msra.mxu0 0.0
    %951 = vmatprep.subr.mxu0 0.0
    %952 = vmatpush2.msra.mxu0 0.0
    %953 = vmatprep.subr.mxu0 0.0
    %954 = vmatpush2.msra.mxu0 0.0
    %955 = vmatprep.subr.mxu0 0.0
    %956 = vmatpush2.msra.mxu0 0.0
    %957 = vmatprep.subr.mxu0 0.0
    %958 = vmatpush2.msra.mxu0 0.0
    %959 = vmatprep.subr.mxu0 0.0
    %960 = vmatpush2.msra.mxu0 0.0
    %961 = vmatprep.subr.mxu0 0.0
    %962 = vmatpush2.msra.mxu0 0.0
    %963 = vmatprep.subr.mxu0 0.0
    %964 = vmatpush2.msra.mxu0 0.0
    %965 = vmatprep.subr.mxu0 0.0
    %966 = vmatpush2.msra.mxu0 0.0
    %967 = vmatprep.subr.mxu0 0.0
    %968 = vmatpush2.msra.mxu0 0.0
    %969 = vmatprep.subr.mxu0 0.0
    %970 = vmatpush2.msra.mxu0 0.0
    %971 = vmatprep.subr.mxu0 0.0
    %972 = vmatpush2.msra.mxu0 0.0
    %973 = vmatprep.subr.mxu0 0.0
    %974 = vmatpush2.msra.mxu0 0.0
    %975 = vmatprep.mubr.f32.mxu0 0.0
    %976 = vmatmul.mubr.f32.gmra.mxu0 %v903
    %v977 = vpop.f32.mrf.mxu0
    %v978 = vadd.f32 0.0, %v977
    %v979 = vpop.f32.mrf.mxu0
    %980 = vmatprep.mubr.f32.mxu0 0.0
    %981 = vmatmul.mubr.f32.gmra.mxu0 %v905
    %v982 = vpop.f32.mrf.mxu0
    %v983 = vpop.f32.mrf.mxu0
    %984 = vmatprep.mubr.f32.mxu0 0.0
    %985 = vmatmul.mubr.f32.gmra.mxu0 %v907
    %v986 = vpop.f32.mrf.mxu0
    %v987 = vadd.f32 0.0, %v986
    %v988 = vpop.f32.mrf.mxu0
    %989 = vmatprep.mubr.f32.mxu0 0.0
    %990 = vmatmul.mubr.f32.gmra.mxu0 %v909
    %v991 = vpop.f32.mrf.mxu0
    %v992 = vpop.f32.mrf.mxu0
    %993 = vdwg.mxu0
    %v994 = vadd.f32 %v888, %v978
    %v995 = vadd.f32 %v889, %v987
    %v996 = vlaneseq
    %v997 = vshrl.u32 %v996, 7
    %v998 = vsub.s32 0, %v997
    %v999 = vrot.slane %v41, %v998
    %v1000 = vadd.f32 %v994, %v999
    %v1001 = vadd.f32 %v995, %v999
    %v1002 = vmax.f32 %v1000, 0.0
    %v1003 = vmax.f32 %v1001, 0.0
    %v1004 = vsel %vm283, %v1002, -inf
    %v1005 = vrot.slane %v1004, 4
    %v1006 = vmax.f32 %v1004, %v1005
    %v1007 = vrot.slane %v1006, 2
    %v1008 = vmax.f32 %v1006, %v1007
    %v1009 = vrot.slane %v1008, 1
    %v1010 = vmax.f32 %v1008, %v1009
    %v1011 = vsel %vm283, %v1003, -inf
    %v1012 = vrot.slane %v1011, 4
    %v1013 = vmax.f32 %v1011, %v1012
    %v1014 = vrot.slane %v1013, 2
    %v1015 = vmax.f32 %v1013, %v1014
    %v1016 = vrot.slane %v1015, 1
    %v1017 = vmax.f32 %v1015, %v1016
    %v1018 = vsel %vm173, %v1010, %v1017
    %v1019 = vmul.f32 %v126, %v1018
    %v1020 = vld [vmem:[%s5] sm:$0xff]
    %v1021 = vld [vmem:[%s5 + $0x8] sm:$0xff]
    %v1022 = vld [vmem:[%s5 + $0x10] sm:$0xff]
    %v1023 = vld [vmem:[%s5 + $0x18] sm:$0xff]
    %v1024 = vlaneseq
    %v1025 = vshrl.u32 %v1024, 7
    %v1026 = vsub.s32 0, %v1025
    %v1027 = vrot.slane %v42, %v1026
    %v1029 = vsel %vm283, %v1019, 0
    %1031 = vmatprep.subr.mxu0 0.0
    %1032 = vmatpush1.msra.mxu0 0.0
    %1033 = vmatprep.subr.mxu0 0.0
    %1034 = vmatpush1.msra.mxu0 0.0
    %1035 = vmatprep.subr.mxu0 0.0
    %1036 = vmatpush1.msra.mxu0 0.0
    %1037 = vmatprep.subr.mxu0 0.0
    %1038 = vmatpush1.msra.mxu0 0.0
    %1039 = vmatprep.subr.mxu0 0.0
    %1040 = vmatpush1.msra.mxu0 0.0
    %1041 = vmatprep.subr.mxu0 0.0
    %1042 = vmatpush1.msra.mxu0 0.0
    %1043 = vmatprep.subr.mxu0 0.0
    %1044 = vmatpush1.msra.mxu0 0.0
    %1045 = vmatprep.subr.mxu0 0.0
    %1046 = vmatpush1.msra.mxu0 0.0
    %1047 = vmatprep.subr.mxu0 0.0
    %1048 = vmatpush1.msra.mxu0 0.0
    %1049 = vmatprep.subr.mxu0 0.0
    %1050 = vmatpush1.msra.mxu0 0.0
    %1051 = vmatprep.subr.mxu0 0.0
    %1052 = vmatpush1.msra.mxu0 0.0
    %1053 = vmatprep.subr.mxu0 0.0
    %1054 = vmatpush1.msra.mxu0 0.0
    %1055 = vmatprep.subr.mxu0 0.0
    %1056 = vmatpush1.msra.mxu0 %v1023
    %1057 = vmatprep.subr.mxu0 0.0
    %1058 = vmatpush1.msra.mxu0 %v1022
    %1059 = vmatprep.subr.mxu0 0.0
    %1060 = vmatpush1.msra.mxu0 %v1021
    %1061 = vmatprep.subr.mxu0 0.0
    %1062 = vmatpush1.msra.mxu0 %v1020
    %1063 = vmatprep.subr.mxu0 0.0
    %1064 = vmatpush2.msra.mxu0 0.0
    %1065 = vmatprep.subr.mxu0 0.0
    %1066 = vmatpush2.msra.mxu0 0.0
    %1067 = vmatprep.subr.mxu0 0.0
    %1068 = vmatpush2.msra.mxu0 0.0
    %1069 = vmatprep.subr.mxu0 0.0
    %1070 = vmatpush2.msra.mxu0 0.0
    %1071 = vmatprep.subr.mxu0 0.0
    %1072 = vmatpush2.msra.mxu0 0.0
    %1073 = vmatprep.subr.mxu0 0.0
    %1074 = vmatpush2.msra.mxu0 0.0
    %1075 = vmatprep.subr.mxu0 0.0
    %1076 = vmatpush2.msra.mxu0 0.0
    %1077 = vmatprep.subr.mxu0 0.0
    %1078 = vmatpush2.msra.mxu0 0.0
    %1079 = vmatprep.subr.mxu0 0.0
    %1080 = vmatpush2.msra.mxu0 0.0
    %1081 = vmatprep.subr.mxu0 0.0
    %1082 = vmatpush2.msra.mxu0 0.0
    %1083 = vmatprep.subr.mxu0 0.0
    %1084 = vmatpush2.msra.mxu0 0.0
    %1085 = vmatprep.subr.mxu0 0.0
    %1086 = vmatpush2.msra.mxu0 0.0
    %1087 = vmatprep.subr.mxu0 0.0
    %1088 = vmatpush2.msra.mxu0 0.0
    %1089 = vmatprep.subr.mxu0 0.0
    %1090 = vmatpush2.msra.mxu0 0.0
    %1091 = vmatprep.subr.mxu0 0.0
    %1092 = vmatpush2.msra.mxu0 0.0
    %1093 = vmatprep.subr.mxu0 0.0
    %1094 = vmatpush2.msra.mxu0 0.0
    %1095 = vmatprep.mubr.f32.mxu0 0.0
    %1096 = vmatmul.mubr.f32.gmra.mxu0 %v1029
    %v1097 = vpop.f32.mrf.mxu0
    %v1098 = vadd.f32 %v1027, %v1097
    %v1099 = vpop.f32.mrf.mxu0
    %1100 = vdwg.mxu0
    %v1101 = vmax.f32 %v1098, 0.0
    %v1102 = vlaneseq
    %v1103 = vshrl.u32 %v1102, 7
    %v1104 = vsub.s32 0, %v1103
    %v1105 = vrot.slane %v43, %v1104
    %v1106 = vmul.f32 %v1101, %v1105
    %vm1107 = vcmask 25600
    %v1108 = vsel %vm1107, %v1106, 0.0
    %1109 = vadd.xlane.f32.xlu0 %v1108
    %v1110 = vpop.xlane.xlu0 %1109
    %v1111 = vlaneseq
    %v1112 = vshrl.u32 %v1111, 7
    %v1113 = vsub.s32 0, %v1112
    %v1114 = vrot.slane %v44, %v1113
    %v1115 = vadd.f32 %v1110, %v1114
    %1117 = vset.pattern.permute.xlu0 0
    %1118 = vperm.xlu0 %1117, %v1115
    %v1119 = vpop.permute.xlu0 %1118
    %1121 = vst [vmem:[%s7] sm:$0x3] %v1119
    // Predicated region
    $region34: #{deepphylo_forward.1} parent=1 // pred_check
      _
    $region35: #{deepphylo_forward.1} parent=1 // pred_check_branch
      %1123 = sbr.rel (0) target = $region37
    $region36: #{deepphylo_forward.1} parent=1 // pred_region
      _
    $region37: #{deepphylo_forward.1} parent=1 // pred_fallthru
      _
    // Predicated region
    $region38: #{deepphylo_forward.1} parent=1 // pred_check
      _
    $region39: #{deepphylo_forward.1} parent=1 // pred_check_branch
      %1125 = sbr.rel (0) target = $region41
    $region40: #{deepphylo_forward.1} parent=1 // pred_region
      _
    $region41: #{deepphylo_forward.1} parent=1 // pred_fallthru
      _
    %1126 = vsyncpa [#allocation3], 1

</llo_original>
